<compile_context>
chip_gen: v6e
topology: v6e:2x2x1
jax: 0.10.0
libtpu: 0.0.40
codegen_flags: <defaults>
</compile_context>

<pallas_src>
import functools

import jax
import jax.numpy as jnp
from jax.experimental import pallas as pl
from jax.experimental.pallas import tpu as pltpu

KERNEL_SIZE = 5
LANE = 128
TARGET_BLOCK_BYTES = 4 << 20   # ~4 MiB per (TILE_R, TL) block
MIN_BLOCK_BYTES = 1 << 20      # don't shrink blocks below ~1 MiB chasing steps
VMEM_LIMIT_BYTES = 48 * 1024 * 1024


def _round_up(v: int, m: int) -> int:
    return ((v + m - 1) // m) * m


def _residual_block_kernel(params_ref, halo_ref, x_ref, res_ref, skip_ref,
                           xpad_scratch, *, dilation: int):
    """One (TILE_R, TL) block of rows (each row = TL contiguous timesteps).

    params_ref (SMEM, f32[16]):
      [0:5]   filter conv taps   [5:10]  gate conv taps
      [10]    filter bias        [11]    gate bias
      [12,13] residual 1x1 conv weight, bias
      [14,15] skip     1x1 conv weight, bias
    halo_ref (VMEM, f32[TILE_R, H]): the `pad` samples preceding each row,
      right-aligned in a 128-lane-multiple width H, zeros on the left (and
      zeros at sequence starts / padded rows).
    x_ref    (VMEM, f32[TILE_R, TL])
    xpad_scratch (VMEM, f32[TILE_R, H + TL]).
      Layout: [ halo (H, right-aligned) | x (TL) ] -> both stores lane-aligned.
    """
    pad = (KERNEL_SIZE - 1) * dilation
    H = _round_up(pad, LANE)
    _, TL = x_ref.shape

    x = x_ref[...]
    # Assemble the left-halo'd view once in VMEM scratch (both stores are
    # lane-aligned, full-width, unmasked).
    xpad_scratch[:, 0:H] = halo_ref[...]
    xpad_scratch[:, pl.ds(H, TL)] = x

    # Hoist scalar (SMEM) loads out of the unrolled tap loop.
    w_f = [params_ref[j] for j in range(KERNEL_SIZE)]
    w_g = [params_ref[KERNEL_SIZE + j] for j in range(KERNEL_SIZE)]
    b_f, b_g = params_ref[10], params_ref[11]
    w_r, b_r = params_ref[12], params_ref[13]
    w_s, b_s = params_ref[14], params_ref[15]

    # Causal dilated conv (k=5) == 5 statically shifted MACs.
    # Last tap (j = K-1) aligns exactly with x; fold the bias into the init.
    filt = w_f[KERNEL_SIZE - 1] * x + b_f
    gate = w_g[KERNEL_SIZE - 1] * x + b_g
    for j in range(KERNEL_SIZE - 1):
        xs = xpad_scratch[:, pl.ds(H - pad + j * dilation, TL)]
        filt = filt + w_f[j] * xs
        gate = gate + w_g[j] * xs

    # sigmoid(g) == 0.5*tanh(0.5*g) + 0.5  (one EUP push instead of exp+div).
    act = jnp.tanh(filt) * (0.5 * jnp.tanh(0.5 * gate) + 0.5)

    res_ref[...] = w_r * act + b_r + x
    skip_ref[...] = w_s * act + b_s


def _pick_time_tile(T: int, pad: int) -> int:
    # Largest candidate that divides T and covers the halo (so the halo of a
    # row always comes from a single previous row).  Fallback: full sequence
    # per row (halo is then all zeros).
    for tl in (2048, 1024, 512, 256, 128):
        if T % tl == 0 and tl >= pad:
            return tl
    return T


def _pick_row_tile(R: int, TL: int) -> tuple[int, int]:
    """Returns (TILE_R, R_padded). TILE_R is a multiple of 8 and divides R_padded."""
    bytes_per_row = TL * 4
    # Target ~4 MiB per (TILE_R, TL) block.
    tile_r = max(8, (TARGET_BLOCK_BYTES // bytes_per_row) // 8 * 8)
    tile_r = min(tile_r, _round_up(R, 8))
    # Guarantee >= 2 grid steps when there are enough rows, so "parallel"
    # actually shards across the two TensorCores on v7x.
    if R >= 16:
        tile_r = min(tile_r, max(8, (R // 2) // 8 * 8))
    # Mild preference for >= 4 steps (pipelining) while blocks stay >= ~1 MiB.
    while (pl.cdiv(R, tile_r) < 4 and tile_r >= 16
           and (tile_r // 2) * bytes_per_row >= MIN_BLOCK_BYTES):
        tile_r = max(8, (tile_r // 2) // 8 * 8)
    r_padded = _round_up(R, tile_r)
    return tile_r, r_padded


def residual_block(x, params, *, dilation: int):
    """x: (B, 1, T) float32 (NCL, like PyTorch Conv1d). Returns (res, skip), same shape."""
    B, C, T = x.shape
    assert C == 1
    pad = (KERNEL_SIZE - 1) * dilation
    H = _round_up(pad, LANE)

    x2d = x.reshape(B, T).astype(jnp.float32)

    TL = _pick_time_tile(T, pad)
    rows_per_seq = T // TL
    R = B * rows_per_seq
    x_rows = x2d.reshape(R, TL)  # fold time onto the sublane axis (free reshape)

    # Per-row causal halo: last `pad` samples of the previous row of the same
    # sequence, zeros at sequence starts.  Right-aligned inside a lane-dense
    # (R, H) slab so its DMA and the in-kernel scratch store are unmasked.
    if rows_per_seq == 1:
        halo = jnp.zeros((R, H), jnp.float32)
    else:
        tails = x_rows[:, TL - pad:]
        prev = jnp.concatenate(
            [jnp.zeros((1, pad), jnp.float32), tails[:-1]], axis=0)
        seq_start = (jnp.arange(R) % rows_per_seq) == 0
        halo = jnp.pad(jnp.where(seq_start[:, None], 0.0, prev),
                       ((0, 0), (H - pad, 0)))

    TILE_R, Rp = _pick_row_tile(R, TL)
    if Rp != R:  # pad rows so the grid divides evenly (zero rows, dropped below)
        x_rows = jnp.pad(x_rows, ((0, Rp - R), (0, 0)))
        halo = jnp.pad(halo, ((0, Rp - R), (0, 0)))
    grid = (Rp // TILE_R,)

    kernel = functools.partial(_residual_block_kernel, dilation=dilation)
    res, skip = pl.pallas_call(
        kernel,
        out_shape=(jax.ShapeDtypeStruct((Rp, TL), jnp.float32),
                   jax.ShapeDtypeStruct((Rp, TL), jnp.float32)),
        grid=grid,
        in_specs=[
            pl.BlockSpec(memory_space=pltpu.MemorySpace.SMEM),   # params
            pl.BlockSpec((TILE_R, H), lambda i: (i, 0)),         # halo rows
            pl.BlockSpec((TILE_R, TL), lambda i: (i, 0)),        # x rows
        ],
        out_specs=(pl.BlockSpec((TILE_R, TL), lambda i: (i, 0)),
                   pl.BlockSpec((TILE_R, TL), lambda i: (i, 0))),
        scratch_shapes=[pltpu.VMEM((TILE_R, H + TL), jnp.float32)],
        compiler_params=pltpu.CompilerParams(
            dimension_semantics=("parallel",),
            vmem_limit_bytes=VMEM_LIMIT_BYTES),
    )(params, halo, x_rows)
    return (res[:R].reshape(B, 1, T), skip[:R].reshape(B, 1, T))


def _reference(x, params, *, dilation: int):
    """Pure-JAX reference mirroring the PyTorch module."""
    B, C, T = x.shape
    x2d = x.reshape(B, T)
    pad = (KERNEL_SIZE - 1) * dilation
    xpad = jnp.pad(x2d, ((0, 0), (pad, 0)))
    filt = sum(params[j] * xpad[:, j * dilation:j * dilation + T]
               for j in range(KERNEL_SIZE)) + params[10]
    gate = sum(params[KERNEL_SIZE + j] * xpad[:, j * dilation:j * dilation + T]
               for j in range(KERNEL_SIZE)) + params[11]
    act = jnp.tanh(filt) * jax.nn.sigmoid(gate)
    res = params[12] * act + params[13] + x2d
    skip = params[14] * act + params[15]
    return res.reshape(B, 1, T), skip.reshape(B, 1, T)


if __name__ == "__main__":
    key = jax.random.PRNGKey(0)
    kx, kp, kx2, kx3 = jax.random.split(key, 4)

    # Deterministic parameter init (shapes match nn.Conv1d(1,1,5) x2 + nn.Conv1d(1,1,1) x2):
    # 5 filter taps, 5 gate taps, filter bias, gate bias, res w, res b, skip w, skip b.
    params = 0.1 * jax.random.normal(kp, (16,), dtype=jnp.float32)

    # Case 1: small canonical shape (single row per sequence, zero halo, padded rows).
    B, C, T, dilation = 2, 1, 128, 2
    x = jax.random.normal(kx, (B, C, T), dtype=jnp.float32)
    res, skip = residual_block(x, params, dilation=dilation)
    jax.block_until_ready((res, skip))
    res_ref, skip_ref = _reference(x, params, dilation=dilation)
    assert res.shape == (B, C, T) and skip.shape == (B, C, T)
    assert jnp.allclose(res, res_ref, atol=1e-5, rtol=1e-5)
    assert jnp.allclose(skip, skip_ref, atol=1e-5, rtol=1e-5)

    # Case 2: multiple time-rows per sequence (per-row halo path + row padding).
    B2, T2, dil2 = 3, 384, 3
    x2 = jax.random.normal(kx2, (B2, 1, T2), dtype=jnp.float32)
    res2, skip2 = residual_block(x2, params, dilation=dil2)
    jax.block_until_ready((res2, skip2))
    res2_ref, skip2_ref = _reference(x2, params, dilation=dil2)
    assert jnp.allclose(res2, res2_ref, atol=1e-5, rtol=1e-5)
    assert jnp.allclose(skip2, skip2_ref, atol=1e-5, rtol=1e-5)

    # Case 3: longer sequences -> multi-step grid (megacore sharding / pipelining path).
    B3, T3, dil3 = 4, 8192, 2
    x3 = jax.random.normal(kx3, (B3, 1, T3), dtype=jnp.float32)
    res3, skip3 = residual_block(x3, params, dilation=dil3)
    jax.block_until_ready((res3, skip3))
    res3_ref, skip3_ref = _reference(x3, params, dilation=dil3)
    assert jnp.allclose(res3, res3_ref, atol=1e-5, rtol=1e-5)
    assert jnp.allclose(skip3, skip3_ref, atol=1e-5, rtol=1e-5)

    print("KERNEL_OK")
</pallas_src>

<mosaic_0001>
module attributes {stable_mosaic.version = 11 : i64} {
  func.func @_residual_block_kernel(%arg0: i32, %arg1: memref<16xf32, #tpu.memory_space<smem>>, %arg2: memref<8x128xf32, #tpu.memory_space<vmem>>, %arg3: memref<8x128xf32, #tpu.memory_space<vmem>>, %arg4: memref<8x128xf32, #tpu.memory_space<vmem>>, %arg5: memref<8x128xf32, #tpu.memory_space<vmem>>, %arg6: memref<8x256xf32, #tpu.memory_space<vmem>>) attributes {dimension_semantics = [#tpu.dimension_semantics<parallel>], iteration_bounds = array<i64: 1>, scalar_prefetch = 0 : i64, scratch_operands = 1 : i64, tpu.core_type = #tpu.core_type<tc>, window_params = [{transform_indices = @transform_0, window_bounds = array<i64: 16>}, {transform_indices = @transform_1, window_bounds = array<i64: 8, 128>}, {transform_indices = @transform_2, window_bounds = array<i64: 8, 128>}, {transform_indices = @transform_3, window_bounds = array<i64: 8, 128>}, {transform_indices = @transform_4, window_bounds = array<i64: 8, 128>}]} {
    %c0 = arith.constant 0 : index
    %c0_0 = arith.constant 0 : index
    %0 = vector.load %arg3[%c0, %c0_0] : memref<8x128xf32, #tpu.memory_space<vmem>>, vector<8x128xf32>
    %c0_1 = arith.constant 0 : index
    %c0_2 = arith.constant 0 : index
    %1 = vector.load %arg2[%c0_1, %c0_2] : memref<8x128xf32, #tpu.memory_space<vmem>>, vector<8x128xf32>
    %c0_3 = arith.constant 0 : index
    %c0_4 = arith.constant 0 : index
    %2 = vector.load %arg6[%c0_3, %c0_4] : memref<8x256xf32, #tpu.memory_space<vmem>>, vector<8x128xf32>
    tpu.vector_store %arg6[%c0_3, %c0_4], %1 {strides = array<i32>} : memref<8x256xf32, #tpu.memory_space<vmem>>, vector<8x128xf32>,
    %c0_5 = arith.constant 0 : index
    %c128 = arith.constant 128 : index
    %3 = vector.load %arg6[%c0_5, %c128] : memref<8x256xf32, #tpu.memory_space<vmem>>, vector<8x128xf32>
    tpu.vector_store %arg6[%c0_5, %c128], %0 {strides = array<i32>} : memref<8x256xf32, #tpu.memory_space<vmem>>, vector<8x128xf32>,
    %c0_6 = arith.constant 0 : index
    %4 = memref.load %arg1[%c0_6] : memref<16xf32, #tpu.memory_space<smem>>
    %c1 = arith.constant 1 : index
    %5 = memref.load %arg1[%c1] : memref<16xf32, #tpu.memory_space<smem>>
    %c2 = arith.constant 2 : index
    %6 = memref.load %arg1[%c2] : memref<16xf32, #tpu.memory_space<smem>>
    %c3 = arith.constant 3 : index
    %7 = memref.load %arg1[%c3] : memref<16xf32, #tpu.memory_space<smem>>
    %c4 = arith.constant 4 : index
    %8 = memref.load %arg1[%c4] : memref<16xf32, #tpu.memory_space<smem>>
    %c5 = arith.constant 5 : index
    %9 = memref.load %arg1[%c5] : memref<16xf32, #tpu.memory_space<smem>>
    %c6 = arith.constant 6 : index
    %10 = memref.load %arg1[%c6] : memref<16xf32, #tpu.memory_space<smem>>
    %c7 = arith.constant 7 : index
    %11 = memref.load %arg1[%c7] : memref<16xf32, #tpu.memory_space<smem>>
    %c8 = arith.constant 8 : index
    %12 = memref.load %arg1[%c8] : memref<16xf32, #tpu.memory_space<smem>>
    %c9 = arith.constant 9 : index
    %13 = memref.load %arg1[%c9] : memref<16xf32, #tpu.memory_space<smem>>
    %c10 = arith.constant 10 : index
    %14 = memref.load %arg1[%c10] : memref<16xf32, #tpu.memory_space<smem>>
    %c11 = arith.constant 11 : index
    %15 = memref.load %arg1[%c11] : memref<16xf32, #tpu.memory_space<smem>>
    %c12 = arith.constant 12 : index
    %16 = memref.load %arg1[%c12] : memref<16xf32, #tpu.memory_space<smem>>
    %c13 = arith.constant 13 : index
    %17 = memref.load %arg1[%c13] : memref<16xf32, #tpu.memory_space<smem>>
    %c14 = arith.constant 14 : index
    %18 = memref.load %arg1[%c14] : memref<16xf32, #tpu.memory_space<smem>>
    %c15 = arith.constant 15 : index
    %19 = memref.load %arg1[%c15] : memref<16xf32, #tpu.memory_space<smem>>
    %20 = vector.broadcast %8 : f32 to vector<8x128xf32>
    %21 = arith.mulf %20, %0 : vector<8x128xf32>
    %22 = vector.broadcast %14 : f32 to vector<8x128xf32>
    %23 = arith.addf %21, %22 : vector<8x128xf32>
    %24 = vector.broadcast %13 : f32 to vector<8x128xf32>
    %25 = arith.mulf %24, %0 : vector<8x128xf32>
    %26 = vector.broadcast %15 : f32 to vector<8x128xf32>
    %27 = arith.addf %25, %26 : vector<8x128xf32>
    %c0_7 = arith.constant 0 : index
    %c120 = arith.constant 120 : index
    %28 = vector.load %arg6[%c0_7, %c120] : memref<8x256xf32, #tpu.memory_space<vmem>>, vector<8x128xf32>
    %29 = vector.broadcast %4 : f32 to vector<8x128xf32>
    %30 = arith.mulf %29, %28 : vector<8x128xf32>
    %31 = arith.addf %23, %30 : vector<8x128xf32>
    %32 = vector.broadcast %9 : f32 to vector<8x128xf32>
    %33 = arith.mulf %32, %28 : vector<8x128xf32>
    %34 = arith.addf %27, %33 : vector<8x128xf32>
    %c0_8 = arith.constant 0 : index
    %c122 = arith.constant 122 : index
    %35 = vector.load %arg6[%c0_8, %c122] : memref<8x256xf32, #tpu.memory_space<vmem>>, vector<8x128xf32>
    %36 = vector.broadcast %5 : f32 to vector<8x128xf32>
    %37 = arith.mulf %36, %35 : vector<8x128xf32>
    %38 = arith.addf %31, %37 : vector<8x128xf32>
    %39 = vector.broadcast %10 : f32 to vector<8x128xf32>
    %40 = arith.mulf %39, %35 : vector<8x128xf32>
    %41 = arith.addf %34, %40 : vector<8x128xf32>
    %c0_9 = arith.constant 0 : index
    %c124 = arith.constant 124 : index
    %42 = vector.load %arg6[%c0_9, %c124] : memref<8x256xf32, #tpu.memory_space<vmem>>, vector<8x128xf32>
    %43 = vector.broadcast %6 : f32 to vector<8x128xf32>
    %44 = arith.mulf %43, %42 : vector<8x128xf32>
    %45 = arith.addf %38, %44 : vector<8x128xf32>
    %46 = vector.broadcast %11 : f32 to vector<8x128xf32>
    %47 = arith.mulf %46, %42 : vector<8x128xf32>
    %48 = arith.addf %41, %47 : vector<8x128xf32>
    %c0_10 = arith.constant 0 : index
    %c126 = arith.constant 126 : index
    %49 = vector.load %arg6[%c0_10, %c126] : memref<8x256xf32, #tpu.memory_space<vmem>>, vector<8x128xf32>
    %50 = vector.broadcast %7 : f32 to vector<8x128xf32>
    %51 = arith.mulf %50, %49 : vector<8x128xf32>
    %52 = arith.addf %45, %51 : vector<8x128xf32>
    %53 = vector.broadcast %12 : f32 to vector<8x128xf32>
    %54 = arith.mulf %53, %49 : vector<8x128xf32>
    %55 = arith.addf %48, %54 : vector<8x128xf32>
    %56 = math.tanh %52 : vector<8x128xf32>
    %cst = arith.constant 5.000000e-01 : f32
    %57 = vector.broadcast %cst : f32 to vector<8x128xf32>
    %58 = arith.mulf %57, %55 : vector<8x128xf32>
    %59 = math.tanh %58 : vector<8x128xf32>
    %cst_11 = arith.constant 5.000000e-01 : f32
    %60 = vector.broadcast %cst_11 : f32 to vector<8x128xf32>
    %61 = arith.mulf %60, %59 : vector<8x128xf32>
    %cst_12 = arith.constant 5.000000e-01 : f32
    %62 = vector.broadcast %cst_12 : f32 to vector<8x128xf32>
    %63 = arith.addf %61, %62 : vector<8x128xf32>
    %64 = arith.mulf %56, %63 : vector<8x128xf32>
    %65 = vector.broadcast %16 : f32 to vector<8x128xf32>
    %66 = arith.mulf %65, %64 : vector<8x128xf32>
    %67 = vector.broadcast %17 : f32 to vector<8x128xf32>
    %68 = arith.addf %66, %67 : vector<8x128xf32>
    %69 = arith.addf %68, %0 : vector<8x128xf32>
    %c0_13 = arith.constant 0 : index
    %c0_14 = arith.constant 0 : index
    %70 = vector.load %arg4[%c0_13, %c0_14] : memref<8x128xf32, #tpu.memory_space<vmem>>, vector<8x128xf32>
    tpu.vector_store %arg4[%c0_13, %c0_14], %69 {strides = array<i32>} : memref<8x128xf32, #tpu.memory_space<vmem>>, vector<8x128xf32>,
    %71 = vector.broadcast %18 : f32 to vector<8x128xf32>
    %72 = arith.mulf %71, %64 : vector<8x128xf32>
    %73 = vector.broadcast %19 : f32 to vector<8x128xf32>
    %74 = arith.addf %72, %73 : vector<8x128xf32>
    %c0_15 = arith.constant 0 : index
    %c0_16 = arith.constant 0 : index
    %75 = vector.load %arg5[%c0_15, %c0_16] : memref<8x128xf32, #tpu.memory_space<vmem>>, vector<8x128xf32>
    tpu.vector_store %arg5[%c0_15, %c0_16], %74 {strides = array<i32>} : memref<8x128xf32, #tpu.memory_space<vmem>>, vector<8x128xf32>,
    return
  }
  func.func @transform_0(%arg0: i32) -> i32 {
    %c0_i32 = arith.constant 0 : i32
    %c0_i32_0 = arith.constant 0 : i32
    return %c0_i32 : i32
  }
  func.func @transform_1(%arg0: i32) -> (i32, i32) {
    %c0_i32 = arith.constant 0 : i32
    %c0_i32_0 = arith.constant 0 : i32
    return %arg0, %c0_i32 : i32, i32
  }
  func.func @transform_2(%arg0: i32) -> (i32, i32) {
    %c0_i32 = arith.constant 0 : i32
    %c0_i32_0 = arith.constant 0 : i32
    return %arg0, %c0_i32 : i32, i32
  }
  func.func @transform_3(%arg0: i32) -> (i32, i32) {
    %c0_i32 = arith.constant 0 : i32
    %c0_i32_0 = arith.constant 0 : i32
    return %arg0, %c0_i32 : i32, i32
  }
  func.func @transform_4(%arg0: i32) -> (i32, i32) {
    %c0_i32 = arith.constant 0 : i32
    %c0_i32_0 = arith.constant 0 : i32
    return %arg0, %c0_i32 : i32, i32
  }
}

</mosaic_0001>

<llo_original>
// kernel: tpu_custom_call.1
$region0: #{tpu_custom_call.1}
  #allocation0 [shape = 'u32[]', space=smem, size = 0x4, offset = 0x4, fixed_abs, tag = 'smem constant byte address 0x4 - core index']
  #allocation1 [shape = 'u32[144,128]{1,0:T(1,128)}', space=vmem, size = 0x12000, scoped, tag = 'internal scratch']
  #allocation2 [shape = 'f32[8,256]{1,0:T(8,128)}', space=vmem, size = 0x2000, scoped, tag = 'scratch operand']
  %s0 = inlined_call_operand.hbm [shape: f32[16], index: 0, kind: input, shape index: {}]
  %s1 = inlined_call_operand.hbm [shape: f32[8,128], index: 1, kind: input, shape index: {}]
  %s2 = inlined_call_operand.hbm [shape: f32[8,128], index: 2, kind: input, shape index: {}]
  %s3 = inlined_call_operand.hbm [shape: f32[8,128], index: 3, kind: output, shape index: {0}]
  %s4 = inlined_call_operand.hbm [shape: f32[8,128], index: 4, kind: output, shape index: {1}]
  %5 = xla_tuple %s3, %s4
  %s6 = sld [smem:[#allocation0]]
  $region42: #{tpu_custom_call.1} parent=0
    _
  %s8 = ssub.s32 1, %s6
  %s9 = scalar_select 0, %s8, %s6
  $region1: #{tpu_custom_call.1} parent=0
    #allocation3 [shape = 'u8[512]{0}', space=smem, size = 0x200, scoped, tag = 'input window, operand 0, single buffered']
    #allocation4 [shape = 's32[1]{0}', space=sflag, size = 0x4, scoped, tag = 'scoped memory for tpu_custom_call.1']
    #allocation5 [shape = 's32[1]{0}', space=sflag, size = 0x4, scoped, tag = 'scoped memory for tpu_custom_call.1']
    #allocation6 [shape = 's32[1]{0}', space=sflag, size = 0x4, scoped, tag = 'scoped memory for tpu_custom_call.1']
    #allocation7 [shape = 'u8[4096]{0}', space=vmem, size = 0x1000, scoped, tag = 'input window, operand 1, single buffered']
    #allocation8 [shape = 'u8[4096]{0}', space=vmem, size = 0x1000, scoped, tag = 'input window, operand 2, single buffered']
    #allocation9 [shape = 's32[1]{0}', space=sflag, size = 0x4, scoped, tag = 'scoped memory for tpu_custom_call.1']
    #allocation10 [shape = 'u8[4096]{0}', space=vmem, size = 0x1000, scoped, tag = 'output window, operand 0, single buffered']
    #allocation11 [shape = 'u8[4096]{0}', space=vmem, size = 0x1000, scoped, tag = 'output window, operand 1, single buffered']
    #allocation12 [shape = 's32[1]{0}', space=sflag, size = 0x4, scoped, tag = 'scoped memory for tpu_custom_call.1']
    %10 = vsyncpa [#allocation6], 0
    %11 = vsyncpa [#allocation4], 0
    %12 = vsyncpa [#allocation9], 0
    %13 = vsyncpa [#allocation5], 0
    %14 = vsyncpa [#allocation12], 0
    // Predicated region
    $region2: #{tpu_custom_call.1} parent=1 // pred_check
      _
    $region3: #{tpu_custom_call.1} parent=1 // pred_check_branch
      %16 = sbr.rel (0) target = $region5
    $region4: #{tpu_custom_call.1} parent=1 // pred_region
      %s18 = ssub.s32 16, 16
      %19 = vsyncadd [#allocation6], %s18
      %22 = dma.hbm_to_smem %s0, 16, [#allocation3], [#allocation6]
    $region5: #{tpu_custom_call.1} parent=1 // pred_fallthru
      _
    // Predicated region
    $region6: #{tpu_custom_call.1} parent=1 // pred_check
      _
    $region7: #{tpu_custom_call.1} parent=1 // pred_check_branch
      %24 = sbr.rel (0) target = $region9
    $region8: #{tpu_custom_call.1} parent=1 // pred_region
      %s26 = ssub.s32 128, 128
      %27 = vsyncadd [#allocation4], %s26
      %s29 = sshll.u32 [#allocation7], 4
      %s30 = int_to_ptr.vmem [resolvable:$true] %s29
      %32 = dma.hbm_to_vmem [thread:$0]  %s1, 128, %s30, [#allocation4]
    $region9: #{tpu_custom_call.1} parent=1 // pred_fallthru
      _
    // Predicated region
    $region10: #{tpu_custom_call.1} parent=1 // pred_check
      _
    $region11: #{tpu_custom_call.1} parent=1 // pred_check_branch
      %34 = sbr.rel (0) target = $region13
    $region12: #{tpu_custom_call.1} parent=1 // pred_region
      %s36 = ssub.s32 128, 128
      %37 = vsyncadd [#allocation9], %s36
      %s39 = sshll.u32 [#allocation8], 4
      %s40 = int_to_ptr.vmem [resolvable:$true] %s39
      %42 = dma.hbm_to_vmem [thread:$0]  %s2, 128, %s40, [#allocation9]
    $region13: #{tpu_custom_call.1} parent=1 // pred_fallthru
      _
    // Predicated region
    $region14: #{tpu_custom_call.1} parent=1 // pred_check
      _
    $region15: #{tpu_custom_call.1} parent=1 // pred_check_branch
      %44 = sbr.rel (0) target = $region17
    $region16: #{tpu_custom_call.1} parent=1 // pred_region
      %45 = dma.done [#allocation6], 16
    $region17: #{tpu_custom_call.1} parent=1 // pred_fallthru
      _
    // Predicated region
    $region18: #{tpu_custom_call.1} parent=1 // pred_check
      _
    $region19: #{tpu_custom_call.1} parent=1 // pred_check_branch
      %47 = sbr.rel (0) target = $region21
    $region20: #{tpu_custom_call.1} parent=1 // pred_region
      %48 = dma.done [#allocation4], 128
    $region21: #{tpu_custom_call.1} parent=1 // pred_fallthru
      _
    // Predicated region
    $region22: #{tpu_custom_call.1} parent=1 // pred_check
      _
    $region23: #{tpu_custom_call.1} parent=1 // pred_check_branch
      %50 = sbr.rel (0) target = $region25
    $region24: #{tpu_custom_call.1} parent=1 // pred_region
      %51 = dma.done [#allocation9], 128
    $region25: #{tpu_custom_call.1} parent=1 // pred_fallthru
      _
    %52 = sfence
    %v53 = vld [vmem:[#allocation8] sm:$0xff]
    %v54 = vld [vmem:[#allocation7] sm:$0xff]
    %55 = vst [vmem:[#allocation2] sm:$0xff] %v54
    %56 = vst [vmem:[#allocation2 + $0x8] sm:$0xff] %v53
    %s57 = sld [smem:[#allocation3]]
    %s58 = sld [smem:[#allocation3 + $0x1]]
    %s59 = sld [smem:[#allocation3 + $0x2]]
    %s60 = sld [smem:[#allocation3 + $0x3]]
    %s61 = sld [smem:[#allocation3 + $0x4]]
    %s62 = sld [smem:[#allocation3 + $0x5]]
    %s63 = sld [smem:[#allocation3 + $0x6]]
    %s64 = sld [smem:[#allocation3 + $0x7]]
    %s65 = sld [smem:[#allocation3 + $0x8]]
    %s66 = sld [smem:[#allocation3 + $0x9]]
    %s67 = sld [smem:[#allocation3 + $0xa]]
    %s68 = sld [smem:[#allocation3 + $0xb]]
    %s69 = sld [smem:[#allocation3 + $0xc]]
    %s70 = sld [smem:[#allocation3 + $0xd]]
    %s71 = sld [smem:[#allocation3 + $0xe]]
    %s72 = sld [smem:[#allocation3 + $0xf]]
    %v73 = vstv %s61
    %v74 = vmul.f32 %v73, %v53
    %v75 = vstv %s67
    %v76 = vadd.f32 %v74, %v75
    %v77 = vstv %s66
    %v78 = vmul.f32 %v77, %v53
    %v79 = vstv %s68
    %v80 = vadd.f32 %v78, %v79
    %v81 = vld [vmem:[#allocation2] sm:$0xff]
    %v82 = vld [vmem:[#allocation2 + $0x8] sm:$0xff]
    %v83 = vstv %s57
    %v84 = vmul.f32 %v83, %v81
    %v85 = vmul.f32 %v83, %v82
    %88 = vrot.lane.b32.xlu0 %v84, 8
    %v89 = vpop.permute.xlu0 %88
    %90 = vrot.lane.b32.xlu0 %v85, 8
    %v91 = vpop.permute.xlu0 %90
    %vm92 = vcmask 64512
    %v93 = vsel %vm92, %v89, %v91
    %v95 = vadd.f32 %v76, %v93
    %v96 = vstv %s62
    %v97 = vmul.f32 %v96, %v81
    %v98 = vmul.f32 %v96, %v82
    %101 = vrot.lane.b32.xlu0 %v97, 8
    %v102 = vpop.permute.xlu0 %101
    %103 = vrot.lane.b32.xlu0 %v98, 8
    %v104 = vpop.permute.xlu0 %103
    %v105 = vsel %vm92, %v102, %v104
    %v107 = vadd.f32 %v80, %v105
    %v108 = vstv %s58
    %v109 = vmul.f32 %v108, %v81
    %v110 = vmul.f32 %v108, %v82
    %113 = vrot.lane.b32.xlu0 %v109, 6
    %v114 = vpop.permute.xlu0 %113
    %115 = vrot.lane.b32.xlu0 %v110, 6
    %v116 = vpop.permute.xlu0 %115
    %vm117 = vcmask 48128
    %v118 = vsel %vm117, %v114, %v116
    %v120 = vadd.f32 %v95, %v118
    %v121 = vstv %s63
    %v122 = vmul.f32 %v121, %v81
    %v123 = vmul.f32 %v121, %v82
    %126 = vrot.lane.b32.xlu0 %v122, 6
    %v127 = vpop.permute.xlu0 %126
    %128 = vrot.lane.b32.xlu0 %v123, 6
    %v129 = vpop.permute.xlu0 %128
    %v130 = vsel %vm117, %v127, %v129
    %v132 = vadd.f32 %v107, %v130
    %v133 = vstv %s59
    %v134 = vmul.f32 %v133, %v81
    %v135 = vmul.f32 %v133, %v82
    %138 = vrot.lane.b32.xlu0 %v134, 4
    %v139 = vpop.permute.xlu0 %138
    %140 = vrot.lane.b32.xlu0 %v135, 4
    %v141 = vpop.permute.xlu0 %140
    %vm142 = vcmask 31744
    %v143 = vsel %vm142, %v139, %v141
    %v145 = vadd.f32 %v120, %v143
    %v146 = vstv %s64
    %v147 = vmul.f32 %v146, %v81
    %v148 = vmul.f32 %v146, %v82
    %151 = vrot.lane.b32.xlu0 %v147, 4
    %v152 = vpop.permute.xlu0 %151
    %153 = vrot.lane.b32.xlu0 %v148, 4
    %v154 = vpop.permute.xlu0 %153
    %v155 = vsel %vm142, %v152, %v154
    %v157 = vadd.f32 %v132, %v155
    %v158 = vstv %s60
    %v159 = vmul.f32 %v158, %v81
    %v160 = vmul.f32 %v158, %v82
    %163 = vrot.lane.b32.xlu0 %v159, 2
    %v164 = vpop.permute.xlu0 %163
    %165 = vrot.lane.b32.xlu0 %v160, 2
    %v166 = vpop.permute.xlu0 %165
    %vm167 = vcmask 15360
    %v168 = vsel %vm167, %v164, %v166
    %v170 = vadd.f32 %v145, %v168
    %v171 = vstv %s65
    %v172 = vmul.f32 %v171, %v81
    %v173 = vmul.f32 %v171, %v82
    %176 = vrot.lane.b32.xlu0 %v172, 2
    %v177 = vpop.permute.xlu0 %176
    %178 = vrot.lane.b32.xlu0 %v173, 2
    %v179 = vpop.permute.xlu0 %178
    %v180 = vsel %vm167, %v177, %v179
    %v182 = vadd.f32 %v157, %v180
    %v183 = vtanh.pop %v170
    %v184 = vmul.f32 %v182, 0.5
    %v185 = vtanh.pop %v184
    %v186 = vmul.f32 %v185, 0.5
    %v187 = vadd.f32 %v186, 0.5
    %v188 = vmul.f32 %v183, %v187
    %v189 = vstv %s69
    %v190 = vmul.f32 %v189, %v188
    %v191 = vstv %s70
    %v192 = vadd.f32 %v190, %v191
    %v193 = vadd.f32 %v192, %v53
    %194 = vst [vmem:[#allocation10] sm:$0xff] %v193
    %v195 = vstv %s71
    %v196 = vmul.f32 %v195, %v188
    %v197 = vstv %s72
    %v198 = vadd.f32 %v196, %v197
    %199 = vst [vmem:[#allocation11] sm:$0xff] %v198
    // Predicated region
    $region26: #{tpu_custom_call.1} parent=1 // pred_check
      _
    $region27: #{tpu_custom_call.1} parent=1 // pred_check_branch
      %201 = sbr.rel (0) target = $region29
    $region28: #{tpu_custom_call.1} parent=1 // pred_region
      %s203 = ssub.s32 128, 128
      %204 = vsyncadd [#allocation5], %s203
      %s206 = sshll.u32 [#allocation10], 4
      %s207 = int_to_ptr.vmem [resolvable:$true] %s206
      %209 = dma.vmem_to_hbm [thread:$0]  %s207, 128, %s3, [#allocation5]
    $region29: #{tpu_custom_call.1} parent=1 // pred_fallthru
      _
    // Predicated region
    $region30: #{tpu_custom_call.1} parent=1 // pred_check
      _
    $region31: #{tpu_custom_call.1} parent=1 // pred_check_branch
      %211 = sbr.rel (0) target = $region33
    $region32: #{tpu_custom_call.1} parent=1 // pred_region
      %s213 = ssub.s32 128, 128
      %214 = vsyncadd [#allocation12], %s213
      %s216 = sshll.u32 [#allocation11], 4
      %s217 = int_to_ptr.vmem [resolvable:$true] %s216
      %219 = dma.vmem_to_hbm [thread:$0]  %s217, 128, %s4, [#allocation12]
    $region33: #{tpu_custom_call.1} parent=1 // pred_fallthru
      _
    // Predicated region
    $region34: #{tpu_custom_call.1} parent=1 // pred_check
      _
    $region35: #{tpu_custom_call.1} parent=1 // pred_check_branch
      %221 = sbr.rel (0) target = $region37
    $region36: #{tpu_custom_call.1} parent=1 // pred_region
      %222 = dma.done [#allocation5], 128
    $region37: #{tpu_custom_call.1} parent=1 // pred_fallthru
      _
    // Predicated region
    $region38: #{tpu_custom_call.1} parent=1 // pred_check
      _
    $region39: #{tpu_custom_call.1} parent=1 // pred_check_branch
      %224 = sbr.rel (0) target = $region41
    $region40: #{tpu_custom_call.1} parent=1 // pred_region
      %225 = dma.done [#allocation12], 128
    $region41: #{tpu_custom_call.1} parent=1 // pred_fallthru
      _
    %226 = vsyncpa [#allocation4], 1
    %227 = vsyncpa [#allocation9], 1
    %228 = vsyncpa [#allocation5], 1
    %229 = vsyncpa [#allocation12], 1
    %230 = vsyncpa [#allocation6], 1

</llo_original>
